<compile_context>
chip_gen: v7x
topology: tpu7x:2x2x1
jax: 0.10.0
libtpu: 0.0.40
codegen_flags: <defaults>
</compile_context>

<pallas_src>
import functools

import jax
import jax.numpy as jnp
from jax.experimental import pallas as pl
from jax.experimental.pallas import tpu as pltpu


def _acnn_kernel(w_ref, p_ref, cb_ref, g_ref, b_ref, w1_ref, w2_ref,
                 o_ref, *, n_batch, hw):
    """conv3x3(im2col matmul) + bias, folded batch-stat BN, ReLU, channel attention.

    w_ref   : (Cout, 9*Cin)   conv weight, im2col layout, bf16
    p_ref   : (9*Cin, N*H*W)  im2col patches (channel/tap major, pixel minor), bf16
    cb_ref  : (Cout, 1)       conv bias, f32
    g_ref   : (Cout, 1)       BN gamma, f32
    b_ref   : (Cout, 1)       BN beta, f32
    w1_ref  : (Cmid, Cout)    attention fc1 weight (1x1 conv), f32
    w2_ref  : (Cout, Cmid)    attention fc2 weight (1x1 conv), f32
    o_ref   : (N, Cout, H*W)  output, batch-major, f32
    """
    eps = 1e-5

    # Hoisted single reads/broadcasts of the small parameters.
    cb = cb_ref[...]     # (Cout, 1)
    g = g_ref[...]       # (Cout, 1)
    b = b_ref[...]       # (Cout, 1)
    w1 = w1_ref[...]     # (Cmid, Cout)
    w2 = w2_ref[...]     # (Cout, Cmid)

    # ---- Conv2d(3x3, stride=1, pad=1) + bias: one bf16 im2col matmul on the MXU,
    #      f32 accumulation ----
    z = jnp.dot(w_ref[...], p_ref[...],
                preferred_element_type=jnp.float32) + cb        # (Cout, N*HW) f32

    # ---- BatchNorm2d (training-mode batch stats, biased variance) folded into a
    #      per-channel affine, then ReLU: one elementwise pass over the big tile ----
    mean = jnp.mean(z, axis=1, keepdims=True)                   # (Cout, 1)
    var = jnp.mean(z * z, axis=1, keepdims=True) - mean * mean  # one-pass variance
    scale = g * jax.lax.rsqrt(var + eps)                        # (Cout, 1), EUP rsqrt
    shift = b - mean * scale
    y = jnp.maximum(z * scale + shift, 0.0)                     # (Cout, N*HW)

    # ---- ChannelAttention pools: 128-aligned lane-segment reduces, assembled in
    #      registers (no scratch, no masked 1-lane stores) ----
    avg_cols = [jnp.mean(y[:, n * hw:(n + 1) * hw], axis=1, keepdims=True)
                for n in range(n_batch)]
    max_cols = [jnp.max(y[:, n * hw:(n + 1) * hw], axis=1, keepdims=True)
                for n in range(n_batch)]
    pooled = jnp.concatenate(avg_cols + max_cols, axis=1)       # (Cout, 2N)

    # ---- Shared MLP (fc1 -> ReLU -> fc2), batched over all 2N pooled vectors ----
    hmid = jnp.maximum(
        jnp.dot(w1, pooled, preferred_element_type=jnp.float32), 0.0)     # (Cmid, 2N)
    logits = jnp.dot(w2, hmid, preferred_element_type=jnp.float32)        # (Cout, 2N)

    # ---- sigmoid(avg + max) scale for all batches at once ----
    att = jax.nn.sigmoid(logits[:, :n_batch] + logits[:, n_batch:])       # (Cout, N)

    # ---- per-batch scale + lane-dense block store, batch-major output ----
    for n in range(n_batch):
        o_ref[n, :, :] = (y[:, n * hw:(n + 1) * hw]
                          * att[:, n:n + 1]).astype(o_ref.dtype)


@jax.jit
def acnn_block(x_nchw, w_oihw, conv_b, bn_gamma, bn_beta, w1_oi11, w2_oi11):
    """Forward pass of ACNNBlock. Input/output are NCHW (PyTorch convention)."""
    N, Cin, H, W = x_nchw.shape
    Cout, _, KH, KW = w_oihw.shape
    Cmid = w1_oi11.shape[0]
    HW = H * W
    KKC = Cin * KH * KW

    # im2col patches, (channel, tap)-major, pixel-minor: (Cin*KH*KW, N*H*W), bf16.
    # Row index = ci*KH*KW + kh*KW + kw ; column index = n*HW + h*W + w.
    # TODO(synk): the gridded production version should skip this 9x expansion and
    # do shifted-slice matmuls from a halo-padded input tile inside the kernel.
    xp = jnp.pad(x_nchw, ((0, 0), (0, 0), (1, 1), (1, 1)))      # conv padding = 1
    taps = [xp[:, :, kh:kh + H, kw:kw + W]
            for kh in range(KH) for kw in range(KW)]
    pat = jnp.stack(taps, axis=2)                               # (N, Cin, KH*KW, H, W)
    patches = pat.transpose(1, 2, 0, 3, 4).reshape(KKC, N * HW).astype(jnp.bfloat16)

    # Matching weight/parameter layouts.
    w2d = w_oihw.reshape(Cout, KKC).astype(jnp.bfloat16)        # (ci, kh, kw) tap order
    cb = conv_b.reshape(Cout, 1)
    g = bn_gamma.reshape(Cout, 1)
    b = bn_beta.reshape(Cout, 1)
    w1 = w1_oi11[:, :, 0, 0]                                    # (Cmid, Cout)
    w2 = w2_oi11[:, :, 0, 0]                                    # (Cout, Cmid)

    cost = pl.CostEstimate(
        flops=2 * Cout * KKC * N * HW + 6 * Cout * N * HW
              + 2 * 2 * Cmid * Cout * 2 * N,
        transcendentals=Cout * (1 + N),
        bytes_accessed=2 * (KKC * N * HW + Cout * KKC)          # bf16 inputs
                       + 4 * (3 * Cout + 2 * Cmid * Cout)       # f32 params
                       + 4 * Cout * N * HW,                     # f32 output
    )

    vmem = pl.BlockSpec(memory_space=pltpu.MemorySpace.VMEM)
    out = pl.pallas_call(
        functools.partial(_acnn_kernel, n_batch=N, hw=HW),
        out_shape=jax.ShapeDtypeStruct((N, Cout, HW), jnp.float32),
        in_specs=[vmem] * 7,
        out_specs=vmem,
        compiler_params=pltpu.CompilerParams(
            vmem_limit_bytes=32 * 1024 * 1024),
        cost_estimate=cost,
    )(w2d, patches, cb, g, b, w1, w2)

    # Batch-major already; only a metadata reshape to NCHW.
    return out.reshape(N, Cout, H, W)


def _reference(x_nchw, w_oihw, conv_b, bn_gamma, bn_beta, w1_oi11, w2_oi11):
    """Pure-JAX f32 reference mirroring the PyTorch forward (training-mode BN)."""
    y = jax.lax.conv_general_dilated(
        x_nchw, w_oihw, window_strides=(1, 1), padding=((1, 1), (1, 1)),
        dimension_numbers=("NCHW", "OIHW", "NCHW"))
    y = y + conv_b[None, :, None, None]
    mean = y.mean(axis=(0, 2, 3), keepdims=True)
    var = ((y - mean) ** 2).mean(axis=(0, 2, 3), keepdims=True)
    y = (y - mean) / jnp.sqrt(var + 1e-5)
    y = y * bn_gamma[None, :, None, None] + bn_beta[None, :, None, None]
    y = jnp.maximum(y, 0.0)
    w1 = w1_oi11[:, :, 0, 0]   # (Cmid, Cout)
    w2 = w2_oi11[:, :, 0, 0]   # (Cout, Cmid)

    def mlp(v):                # v: (N, Cout)
        return jnp.maximum(v @ w1.T, 0.0) @ w2.T

    avg = y.mean(axis=(2, 3))
    mx = y.max(axis=(2, 3))
    att = jax.nn.sigmoid(mlp(avg) + mlp(mx))
    return y * att[:, :, None, None]


if __name__ == "__main__":
    # Small deterministic problem: batch=2, in_channels=4, out_channels=32,
    # spatial 16x16 (out_channels=32 so that ratio=16 gives hidden=2).
    N, Cin, Cout, S, K, ratio = 2, 4, 32, 16, 3, 16
    Cmid = Cout // ratio

    keys = jax.random.split(jax.random.PRNGKey(0), 7)
    x = jax.random.normal(keys[0], (N, Cin, S, S), jnp.float32)
    w_oihw = jax.random.normal(keys[1], (Cout, Cin, K, K), jnp.float32) * 0.1
    conv_b = jax.random.normal(keys[2], (Cout,), jnp.float32) * 0.1
    bn_gamma = 1.0 + 0.1 * jax.random.normal(keys[3], (Cout,), jnp.float32)
    bn_beta = 0.1 * jax.random.normal(keys[4], (Cout,), jnp.float32)
    w1_oi11 = jax.random.normal(keys[5], (Cmid, Cout, 1, 1), jnp.float32) * 0.1
    w2_oi11 = jax.random.normal(keys[6], (Cout, Cmid, 1, 1), jnp.float32) * 0.1

    out = acnn_block(x, w_oihw, conv_b, bn_gamma, bn_beta, w1_oi11, w2_oi11)
    out = jax.block_until_ready(out)

    ref = _reference(x, w_oihw, conv_b, bn_gamma, bn_beta, w1_oi11, w2_oi11)
    assert out.shape == (N, Cout, S, S), out.shape
    # Tolerance loosened slightly for the bf16 MXU operands (f32 accumulation).
    assert jnp.allclose(out, ref, atol=3e-2, rtol=3e-2), float(
        jnp.max(jnp.abs(out - ref)))

    print("KERNEL_OK")
</pallas_src>

<mosaic_0001>
module attributes {stable_mosaic.version = 11 : i64} {
  func.func @_acnn_kernel(%arg0: memref<32x36xbf16, #tpu.memory_space<vmem>>, %arg1: memref<36x512xbf16, #tpu.memory_space<vmem>>, %arg2: memref<32x1xf32, #tpu.memory_space<vmem>>, %arg3: memref<32x1xf32, #tpu.memory_space<vmem>>, %arg4: memref<32x1xf32, #tpu.memory_space<vmem>>, %arg5: memref<2x32xf32, #tpu.memory_space<vmem>>, %arg6: memref<32x2xf32, #tpu.memory_space<vmem>>, %arg7: memref<2x32x256xf32, #tpu.memory_space<vmem>>) attributes {dimension_semantics = [], scalar_prefetch = 0 : i64, scratch_operands = 0 : i64, tpu.core_type = #tpu.core_type<tc>} {
    %c0 = arith.constant 0 : index
    %c0_0 = arith.constant 0 : index
    %0 = vector.load %arg2[%c0, %c0_0] : memref<32x1xf32, #tpu.memory_space<vmem>>, vector<32x1xf32>
    %c0_1 = arith.constant 0 : index
    %c0_2 = arith.constant 0 : index
    %1 = vector.load %arg3[%c0_1, %c0_2] : memref<32x1xf32, #tpu.memory_space<vmem>>, vector<32x1xf32>
    %c0_3 = arith.constant 0 : index
    %c0_4 = arith.constant 0 : index
    %2 = vector.load %arg4[%c0_3, %c0_4] : memref<32x1xf32, #tpu.memory_space<vmem>>, vector<32x1xf32>
    %c0_5 = arith.constant 0 : index
    %c0_6 = arith.constant 0 : index
    %3 = vector.load %arg5[%c0_5, %c0_6] : memref<2x32xf32, #tpu.memory_space<vmem>>, vector<2x32xf32>
    %c0_7 = arith.constant 0 : index
    %c0_8 = arith.constant 0 : index
    %4 = vector.load %arg6[%c0_7, %c0_8] : memref<32x2xf32, #tpu.memory_space<vmem>>, vector<32x2xf32>
    %c0_9 = arith.constant 0 : index
    %c0_10 = arith.constant 0 : index
    %5 = vector.load %arg0[%c0_9, %c0_10] : memref<32x36xbf16, #tpu.memory_space<vmem>>, vector<32x36xbf16>
    %c0_11 = arith.constant 0 : index
    %c0_12 = arith.constant 0 : index
    %6 = vector.load %arg1[%c0_11, %c0_12] : memref<36x512xbf16, #tpu.memory_space<vmem>>, vector<36x512xbf16>
    %cst = arith.constant dense<0.000000e+00> : vector<32x512xf32>
    %7 = tpu.matmul %5, %6, %cst {dimension_numbers = #tpu.dot_dimension_numbers<[1], [0], [0], [1], [0, 0, 1, 1], [], []>} : vector<32x36xbf16>, vector<36x512xbf16>, vector<32x512xf32> -> vector<32x512xf32>
    %8 = vector.broadcast %0 : vector<32x1xf32> to vector<32x512xf32>
    %9 = arith.addf %7, %8 : vector<32x512xf32>
    %cst_13 = arith.constant dense<0.000000e+00> : vector<32xf32>
    %10 = vector.multi_reduction <add>, %9, %cst_13 [1] : vector<32x512xf32> to vector<32xf32>
    %11 = vector.shape_cast %10 : vector<32xf32> to vector<32x1xf32>
    %cst_14 = arith.constant 5.120000e+02 : f32
    %12 = vector.broadcast %cst_14 : f32 to vector<32x1xf32>
    %13 = arith.divf %11, %12 : vector<32x1xf32>
    %14 = arith.mulf %9, %9 : vector<32x512xf32>
    %cst_15 = arith.constant dense<0.000000e+00> : vector<32xf32>
    %15 = vector.multi_reduction <add>, %14, %cst_15 [1] : vector<32x512xf32> to vector<32xf32>
    %16 = vector.shape_cast %15 : vector<32xf32> to vector<32x1xf32>
    %cst_16 = arith.constant 5.120000e+02 : f32
    %17 = vector.broadcast %cst_16 : f32 to vector<32x1xf32>
    %18 = arith.divf %16, %17 : vector<32x1xf32>
    %19 = arith.mulf %13, %13 : vector<32x1xf32>
    %20 = arith.subf %18, %19 : vector<32x1xf32>
    %cst_17 = arith.constant 9.99999974E-6 : f32
    %21 = vector.broadcast %cst_17 : f32 to vector<32x1xf32>
    %22 = arith.addf %20, %21 : vector<32x1xf32>
    %23 = math.rsqrt %22 : vector<32x1xf32>
    %24 = arith.mulf %1, %23 : vector<32x1xf32>
    %25 = arith.mulf %13, %24 : vector<32x1xf32>
    %26 = arith.subf %2, %25 : vector<32x1xf32>
    %27 = vector.broadcast %24 : vector<32x1xf32> to vector<32x512xf32>
    %28 = arith.mulf %9, %27 : vector<32x512xf32>
    %29 = vector.broadcast %26 : vector<32x1xf32> to vector<32x512xf32>
    %30 = arith.addf %28, %29 : vector<32x512xf32>
    %cst_18 = arith.constant 0.000000e+00 : f32
    %31 = vector.broadcast %cst_18 : f32 to vector<32x512xf32>
    %32 = arith.maximumf %30, %31 : vector<32x512xf32>
    %33 = vector.extract_strided_slice %32 {offsets = [0, 0], sizes = [32, 256], strides = [1, 1]} : vector<32x512xf32> to vector<32x256xf32>
    %cst_19 = arith.constant dense<0.000000e+00> : vector<32xf32>
    %34 = vector.multi_reduction <add>, %33, %cst_19 [1] : vector<32x256xf32> to vector<32xf32>
    %35 = vector.shape_cast %34 : vector<32xf32> to vector<32x1xf32>
    %cst_20 = arith.constant 2.560000e+02 : f32
    %36 = vector.broadcast %cst_20 : f32 to vector<32x1xf32>
    %37 = arith.divf %35, %36 : vector<32x1xf32>
    %38 = vector.extract_strided_slice %32 {offsets = [0, 256], sizes = [32, 256], strides = [1, 1]} : vector<32x512xf32> to vector<32x256xf32>
    %cst_21 = arith.constant dense<0.000000e+00> : vector<32xf32>
    %39 = vector.multi_reduction <add>, %38, %cst_21 [1] : vector<32x256xf32> to vector<32xf32>
    %40 = vector.shape_cast %39 : vector<32xf32> to vector<32x1xf32>
    %cst_22 = arith.constant 2.560000e+02 : f32
    %41 = vector.broadcast %cst_22 : f32 to vector<32x1xf32>
    %42 = arith.divf %40, %41 : vector<32x1xf32>
    %43 = vector.extract_strided_slice %32 {offsets = [0, 0], sizes = [32, 256], strides = [1, 1]} : vector<32x512xf32> to vector<32x256xf32>
    %cst_23 = arith.constant dense<0xFF800000> : vector<32xf32>
    %44 = vector.multi_reduction <maximumf>, %43, %cst_23 [1] : vector<32x256xf32> to vector<32xf32>
    %45 = vector.shape_cast %44 : vector<32xf32> to vector<32x1xf32>
    %46 = vector.extract_strided_slice %32 {offsets = [0, 256], sizes = [32, 256], strides = [1, 1]} : vector<32x512xf32> to vector<32x256xf32>
    %cst_24 = arith.constant dense<0xFF800000> : vector<32xf32>
    %47 = vector.multi_reduction <maximumf>, %46, %cst_24 [1] : vector<32x256xf32> to vector<32xf32>
    %48 = vector.shape_cast %47 : vector<32xf32> to vector<32x1xf32>
    %49 = tpu.concatenate %37, %42, %45, %48 in 1 : vector<32x1xf32>, vector<32x1xf32>, vector<32x1xf32>, vector<32x1xf32> -> vector<32x4xf32>
    %cst_25 = arith.constant dense<0.000000e+00> : vector<2x4xf32>
    %50 = tpu.matmul %3, %49, %cst_25 {dimension_numbers = #tpu.dot_dimension_numbers<[1], [0], [0], [1], [0, 0, 1, 1], [], []>} : vector<2x32xf32>, vector<32x4xf32>, vector<2x4xf32> -> vector<2x4xf32>
    %cst_26 = arith.constant 0.000000e+00 : f32
    %51 = vector.broadcast %cst_26 : f32 to vector<2x4xf32>
    %52 = arith.maximumf %50, %51 : vector<2x4xf32>
    %cst_27 = arith.constant dense<0.000000e+00> : vector<32x4xf32>
    %53 = tpu.matmul %4, %52, %cst_27 {dimension_numbers = #tpu.dot_dimension_numbers<[1], [0], [0], [1], [0, 0, 1, 1], [], []>} : vector<32x2xf32>, vector<2x4xf32>, vector<32x4xf32> -> vector<32x4xf32>
    %54 = vector.extract_strided_slice %53 {offsets = [0, 0], sizes = [32, 2], strides = [1, 1]} : vector<32x4xf32> to vector<32x2xf32>
    %55 = vector.extract_strided_slice %53 {offsets = [0, 2], sizes = [32, 2], strides = [1, 1]} : vector<32x4xf32> to vector<32x2xf32>
    %56 = arith.addf %54, %55 : vector<32x2xf32>
    %57 = arith.negf %56 : vector<32x2xf32>
    %58 = math.exp %57 : vector<32x2xf32>
    %cst_28 = arith.constant 1.000000e+00 : f32
    %59 = vector.broadcast %cst_28 : f32 to vector<32x2xf32>
    %60 = arith.addf %59, %58 : vector<32x2xf32>
    %61 = arith.divf %59, %60 : vector<32x2xf32>
    %62 = vector.extract_strided_slice %32 {offsets = [0, 0], sizes = [32, 256], strides = [1, 1]} : vector<32x512xf32> to vector<32x256xf32>
    %63 = vector.extract_strided_slice %61 {offsets = [0, 0], sizes = [32, 1], strides = [1, 1]} : vector<32x2xf32> to vector<32x1xf32>
    %64 = vector.broadcast %63 : vector<32x1xf32> to vector<32x256xf32>
    %65 = arith.mulf %62, %64 : vector<32x256xf32>
    %c0_29 = arith.constant 0 : index
    %c0_30 = arith.constant 0 : index
    %c0_31 = arith.constant 0 : index
    %66 = vector.load %arg7[%c0_29, %c0_30, %c0_31] : memref<2x32x256xf32, #tpu.memory_space<vmem>>, vector<1x32x256xf32>
    %67 = vector.shape_cast %66 : vector<1x32x256xf32> to vector<32x256xf32>
    %68 = vector.shape_cast %65 : vector<32x256xf32> to vector<1x32x256xf32>
    tpu.vector_store %arg7[%c0_29, %c0_30, %c0_31], %68 {strides = array<i32>} : memref<2x32x256xf32, #tpu.memory_space<vmem>>, vector<1x32x256xf32>,
    %69 = vector.extract_strided_slice %32 {offsets = [0, 256], sizes = [32, 256], strides = [1, 1]} : vector<32x512xf32> to vector<32x256xf32>
    %70 = vector.extract_strided_slice %61 {offsets = [0, 1], sizes = [32, 1], strides = [1, 1]} : vector<32x2xf32> to vector<32x1xf32>
    %71 = vector.broadcast %70 : vector<32x1xf32> to vector<32x256xf32>
    %72 = arith.mulf %69, %71 : vector<32x256xf32>
    %c1 = arith.constant 1 : index
    %c0_32 = arith.constant 0 : index
    %c0_33 = arith.constant 0 : index
    %73 = vector.load %arg7[%c1, %c0_32, %c0_33] : memref<2x32x256xf32, #tpu.memory_space<vmem>>, vector<1x32x256xf32>
    %74 = vector.shape_cast %73 : vector<1x32x256xf32> to vector<32x256xf32>
    %75 = vector.shape_cast %72 : vector<32x256xf32> to vector<1x32x256xf32>
    tpu.vector_store %arg7[%c1, %c0_32, %c0_33], %75 {strides = array<i32>} : memref<2x32x256xf32, #tpu.memory_space<vmem>>, vector<1x32x256xf32>,
    return
  }
}

</mosaic_0001>

<llo_original>
// kernel: acnn_block.1
$region0: #{acnn_block.1}
  #allocation0 [shape = 'u32[]', space=smem, size = 0x4, offset = 0x4, fixed_abs, tag = 'smem constant byte address 0x4 - core index']
  #allocation1 [shape = 'u32[144,128]{1,0:T(1,128)}', space=vmem, size = 0x12000, scoped, tag = 'internal scratch']
  %s0 = inlined_call_operand.vmem [shape: bf16[32,36], index: 0, kind: input, shape index: {}]
  %s1 = inlined_call_operand.vmem [shape: bf16[36,512], index: 1, kind: input, shape index: {}]
  %s2 = inlined_call_operand.vmem [shape: f32[32,1], index: 2, kind: input, shape index: {}]
  %s3 = inlined_call_operand.vmem [shape: f32[32,1], index: 3, kind: input, shape index: {}]
  %s4 = inlined_call_operand.vmem [shape: f32[32,1], index: 4, kind: input, shape index: {}]
  %s5 = inlined_call_operand.vmem [shape: f32[2,32], index: 5, kind: input, shape index: {}]
  %s6 = inlined_call_operand.vmem [shape: f32[32,2], index: 6, kind: input, shape index: {}]
  %s7 = inlined_call_operand.vmem [shape: f32[2,32,256], index: 7, kind: output, shape index: {}]
  %s8 = sld [smem:[#allocation0]]
  $region38: #{acnn_block.1} parent=0
    _
  %s10 = ssub.s32 1, %s8
  %s11 = scalar_select 0, %s10, %s8
  // Predicated region
  $region2: #{acnn_block.1} parent=0 // pred_check
    _
  $region3: #{acnn_block.1} parent=0 // pred_check_branch
    %13 = sbr.rel (0) target = $region5
  $region4: #{acnn_block.1} parent=0 // pred_region
    _
  $region5: #{acnn_block.1} parent=0 // pred_fallthru
    _
  // Predicated region
  $region6: #{acnn_block.1} parent=0 // pred_check
    _
  $region7: #{acnn_block.1} parent=0 // pred_check_branch
    %15 = sbr.rel (0) target = $region9
  $region8: #{acnn_block.1} parent=0 // pred_region
    _
  $region9: #{acnn_block.1} parent=0 // pred_fallthru
    _
  // Predicated region
  $region10: #{acnn_block.1} parent=0 // pred_check
    _
  $region11: #{acnn_block.1} parent=0 // pred_check_branch
    %17 = sbr.rel (0) target = $region13
  $region12: #{acnn_block.1} parent=0 // pred_region
    _
  $region13: #{acnn_block.1} parent=0 // pred_fallthru
    _
  // Predicated region
  $region14: #{acnn_block.1} parent=0 // pred_check
    _
  $region15: #{acnn_block.1} parent=0 // pred_check_branch
    %19 = sbr.rel (0) target = $region17
  $region16: #{acnn_block.1} parent=0 // pred_region
    _
  $region17: #{acnn_block.1} parent=0 // pred_fallthru
    _
  // Predicated region
  $region18: #{acnn_block.1} parent=0 // pred_check
    _
  $region19: #{acnn_block.1} parent=0 // pred_check_branch
    %21 = sbr.rel (0) target = $region21
  $region20: #{acnn_block.1} parent=0 // pred_region
    _
  $region21: #{acnn_block.1} parent=0 // pred_fallthru
    _
  // Predicated region
  $region22: #{acnn_block.1} parent=0 // pred_check
    _
  $region23: #{acnn_block.1} parent=0 // pred_check_branch
    %23 = sbr.rel (0) target = $region25
  $region24: #{acnn_block.1} parent=0 // pred_region
    _
  $region25: #{acnn_block.1} parent=0 // pred_fallthru
    _
  // Predicated region
  $region26: #{acnn_block.1} parent=0 // pred_check
    _
  $region27: #{acnn_block.1} parent=0 // pred_check_branch
    %25 = sbr.rel (0) target = $region29
  $region28: #{acnn_block.1} parent=0 // pred_region
    _
  $region29: #{acnn_block.1} parent=0 // pred_fallthru
    _
  %v27 = vld [vmem:[%s2] sm:$0xff]
  %v28 = vld [vmem:[%s2 + $0x8] sm:$0xff]
  %v29 = vld [vmem:[%s2 + $0x10] sm:$0xff]
  %v30 = vld [vmem:[%s2 + $0x18] sm:$0xff]
  %v31 = vld [vmem:[%s3] sm:$0xff]
  %v32 = vld [vmem:[%s3 + $0x8] sm:$0xff]
  %v33 = vld [vmem:[%s3 + $0x10] sm:$0xff]
  %v34 = vld [vmem:[%s3 + $0x18] sm:$0xff]
  %v35 = vld [vmem:[%s4] sm:$0xff]
  %v36 = vld [vmem:[%s4 + $0x8] sm:$0xff]
  %v37 = vld [vmem:[%s4 + $0x10] sm:$0xff]
  %v38 = vld [vmem:[%s4 + $0x18] sm:$0xff]
  %v39 = vld [vmem:[%s5] sm:$0x3]
  %v40 = vld [vmem:[%s6] sm:$0xff]
  %v41 = vld [vmem:[%s6 + $0x8] sm:$0xff]
  %v42 = vld [vmem:[%s6 + $0x10] sm:$0xff]
  %v43 = vld [vmem:[%s6 + $0x18] sm:$0xff]
  %v44 = vld [vmem:[%s0] sm:$0xf]
  %v45 = vld [vmem:[%s0 + $0x4] sm:$0xf]
  %v46 = vld [vmem:[%s0 + $0x8] sm:$0xf]
  %v47 = vld [vmem:[%s0 + $0xc] sm:$0xf]
  %v48 = vld [vmem:[%s1] sm:$0xff]
  %v49 = vld [vmem:[%s1 + $0x8] sm:$0xff]
  %v50 = vld [vmem:[%s1 + $0x10] sm:$0xff]
  %v51 = vld [vmem:[%s1 + $0x18] sm:$0xff]
  %v52 = vld [vmem:[%s1 + $0x20] sm:$0xff]
  %v53 = vld [vmem:[%s1 + $0x28] sm:$0xff]
  %v54 = vld [vmem:[%s1 + $0x30] sm:$0xff]
  %v55 = vld [vmem:[%s1 + $0x38] sm:$0xff]
  %v56 = vld [vmem:[%s1 + $0x40] sm:$0x33]
  %v57 = vld [vmem:[%s1 + $0x48] sm:$0x33]
  %59 = vset.pattern.permute.xlu0 0
  %60 = vperm.xlu0 %59, %v27
  %v61 = vpop.permute.xlu0 %60
  %64 = vset.pattern.permute.xlu0 0
  %65 = vperm.xlu0 %64, %v28
  %v66 = vpop.permute.xlu0 %65
  %69 = vset.pattern.permute.xlu0 0
  %70 = vperm.xlu0 %69, %v29
  %v71 = vpop.permute.xlu0 %70
  %74 = vset.pattern.permute.xlu0 0
  %75 = vperm.xlu0 %74, %v30
  %v76 = vpop.permute.xlu0 %75
  %v82 = vunpack.c.l.b16 %v44
  %v83 = vunpack.c.l.b16 %v45
  %v84 = vunpack.c.l.b16 %v46
  %v85 = vunpack.c.l.b16 %v47
  %v86 = vpack.c.b16 %v83, %v82
  %v87 = vpack.c.b16 %v85, %v84
  %v98 = vunpack.c.l.b16 %v48
  %v99 = vunpack.c.h.b16 %v48
  %v100 = vunpack.c.l.b16 %v49
  %v101 = vunpack.c.h.b16 %v49
  %v102 = vunpack.c.l.b16 %v50
  %v103 = vunpack.c.h.b16 %v50
  %v104 = vunpack.c.l.b16 %v51
  %v105 = vunpack.c.h.b16 %v51
  %v106 = vunpack.c.l.b16 %v52
  %v107 = vunpack.c.h.b16 %v52
  %v108 = vunpack.c.l.b16 %v53
  %v109 = vunpack.c.h.b16 %v53
  %v110 = vunpack.c.l.b16 %v54
  %v111 = vunpack.c.h.b16 %v54
  %v112 = vunpack.c.l.b16 %v55
  %v113 = vunpack.c.h.b16 %v55
  %v114 = vunpack.c.l.b16 %v56
  %v115 = vunpack.c.h.b16 %v56
  %v116 = vunpack.c.l.b16 %v57
  %v117 = vunpack.c.h.b16 %v57
  %v118 = vpack.c.b16 %v102, %v98
  %v119 = vpack.c.b16 %v103, %v99
  %v120 = vpack.c.b16 %v104, %v100
  %v121 = vpack.c.b16 %v105, %v101
  %v122 = vpack.c.b16 %v110, %v106
  %v123 = vpack.c.b16 %v111, %v107
  %v124 = vpack.c.b16 %v112, %v108
  %v125 = vpack.c.b16 %v113, %v109
  %v126 = vpack.c.b16 %v114, %v114
  %v127 = vpack.c.b16 %v115, %v115
  %v128 = vpack.c.b16 %v116, %v116
  %v129 = vpack.c.b16 %v117, %v117
  %vm138 = vcmask 293888
  %v140 = vsel %vm138, %v86, 0
  %v143 = vsel %vm138, %v87, 0
  %vm145 = vcmask 1041408
  %v147 = vsel %vm145, %v126, 0
  %v150 = vsel %vm145, %v127, 0
  %v153 = vsel %vm145, %v128, 0
  %v156 = vsel %vm145, %v129, 0
  %158 = vmatprep.subr.bf16.mxu0 %v119
  %159 = vmatpush1.bf16.msra.mxu0 %v118
  %160 = vmatprep.subr.bf16.mxu0 %v123
  %161 = vmatpush1.bf16.msra.mxu0 %v122
  %162 = vmatprep.subr.bf16.mxu0 %v150
  %163 = vmatpush1.bf16.msra.mxu0 %v147
  %164 = vmatprep.subr.bf16.mxu0 0
  %165 = vmatpush1.bf16.msra.mxu0 0
  %166 = vmatprep.subr.bf16.mxu0 0
  %167 = vmatpush1.bf16.msra.mxu0 0
  %168 = vmatprep.subr.bf16.mxu0 0
  %169 = vmatpush1.bf16.msra.mxu0 0
  %170 = vmatprep.subr.bf16.mxu0 0
  %171 = vmatpush1.bf16.msra.mxu0 0
  %172 = vmatprep.subr.bf16.mxu0 0
  %173 = vmatpush1.bf16.msra.mxu0 0
  %174 = vmatprep.subr.bf16.mxu0 0
  %175 = vmatpush1.bf16.msra.mxu0 0
  %176 = vmatprep.subr.bf16.mxu0 0
  %177 = vmatpush1.bf16.msra.mxu0 0
  %178 = vmatprep.subr.bf16.mxu0 0
  %179 = vmatpush1.bf16.msra.mxu0 0
  %180 = vmatprep.subr.bf16.mxu0 0
  %181 = vmatpush1.bf16.msra.mxu0 0
  %182 = vmatprep.subr.bf16.mxu0 0
  %183 = vmatpush1.bf16.msra.mxu0 0
  %184 = vmatprep.subr.bf16.mxu0 0
  %185 = vmatpush1.bf16.msra.mxu0 0
  %186 = vmatprep.subr.bf16.mxu0 0
  %187 = vmatpush1.bf16.msra.mxu0 0
  %188 = vmatprep.subr.bf16.mxu0 0
  %189 = vmatpush1.bf16.msra.mxu0 0
  %190 = vmatprep.mubr.bf16.mxu0 0
  %191 = vmatmul.mubr.bf16.gmra.mrb[0].mxu0 %v140
  %v192 = vpop.f32.mrb[0].mxu0
  %v193 = vadd.f32 %v61, %v192
  %v194 = vpop.f32.mrb[0].mxu0
  %v195 = vadd.f32 %v61, %v194
  %v196 = vpop.f32.mrb[0].mxu0
  %v197 = vadd.f32 %v66, %v196
  %v198 = vpop.f32.mrb[0].mxu0
  %v199 = vadd.f32 %v66, %v198
  %200 = vmatprep.mubr.bf16.mxu0 0
  %201 = vmatmul.mubr.bf16.gmra.mrb[0].mxu0 %v143
  %v202 = vpop.f32.mrb[0].mxu0
  %v203 = vadd.f32 %v71, %v202
  %v204 = vpop.f32.mrb[0].mxu0
  %v205 = vadd.f32 %v71, %v204
  %v206 = vpop.f32.mrb[0].mxu0
  %v207 = vadd.f32 %v76, %v206
  %v208 = vpop.f32.mrb[0].mxu0
  %v209 = vadd.f32 %v76, %v208
  %210 = vdwg.mxu0
  %211 = vmatprep.subr.bf16.mxu0 %v121
  %212 = vmatpush1.bf16.msra.mxu0 %v120
  %213 = vmatprep.subr.bf16.mxu0 %v125
  %214 = vmatpush1.bf16.msra.mxu0 %v124
  %215 = vmatprep.subr.bf16.mxu0 %v156
  %216 = vmatpush1.bf16.msra.mxu0 %v153
  %217 = vmatprep.subr.bf16.mxu0 0
  %218 = vmatpush1.bf16.msra.mxu0 0
  %219 = vmatprep.subr.bf16.mxu0 0
  %220 = vmatpush1.bf16.msra.mxu0 0
  %221 = vmatprep.subr.bf16.mxu0 0
  %222 = vmatpush1.bf16.msra.mxu0 0
  %223 = vmatprep.subr.bf16.mxu0 0
  %224 = vmatpush1.bf16.msra.mxu0 0
  %225 = vmatprep.subr.bf16.mxu0 0
  %226 = vmatpush1.bf16.msra.mxu0 0
  %227 = vmatprep.subr.bf16.mxu0 0
  %228 = vmatpush1.bf16.msra.mxu0 0
  %229 = vmatprep.subr.bf16.mxu0 0
  %230 = vmatpush1.bf16.msra.mxu0 0
  %231 = vmatprep.subr.bf16.mxu0 0
  %232 = vmatpush1.bf16.msra.mxu0 0
  %233 = vmatprep.subr.bf16.mxu0 0
  %234 = vmatpush1.bf16.msra.mxu0 0
  %235 = vmatprep.subr.bf16.mxu0 0
  %236 = vmatpush1.bf16.msra.mxu0 0
  %237 = vmatprep.subr.bf16.mxu0 0
  %238 = vmatpush1.bf16.msra.mxu0 0
  %239 = vmatprep.subr.bf16.mxu0 0
  %240 = vmatpush1.bf16.msra.mxu0 0
  %241 = vmatprep.subr.bf16.mxu0 0
  %242 = vmatpush1.bf16.msra.mxu0 0
  %243 = vmatprep.mubr.bf16.mxu0 0
  %244 = vmatmul.mubr.bf16.gmra.mrb[0].mxu0 %v140
  %v245 = vpop.f32.mrb[0].mxu0
  %v246 = vadd.f32 %v61, %v245
  %v247 = vpop.f32.mrb[0].mxu0
  %v248 = vadd.f32 %v61, %v247
  %v249 = vpop.f32.mrb[0].mxu0
  %v250 = vadd.f32 %v66, %v249
  %v251 = vpop.f32.mrb[0].mxu0
  %v252 = vadd.f32 %v66, %v251
  %253 = vmatprep.mubr.bf16.mxu0 0
  %254 = vmatmul.mubr.bf16.gmra.mrb[0].mxu0 %v143
  %v255 = vpop.f32.mrb[0].mxu0
  %v256 = vadd.f32 %v71, %v255
  %v257 = vpop.f32.mrb[0].mxu0
  %v258 = vadd.f32 %v71, %v257
  %v259 = vpop.f32.mrb[0].mxu0
  %v260 = vadd.f32 %v76, %v259
  %v261 = vpop.f32.mrb[0].mxu0
  %v262 = vadd.f32 %v76, %v261
  %263 = vdwg.mxu0
  %v264 = vadd.f32 %v193, %v195
  %v265 = vadd.f32 %v264, %v246
  %v266 = vadd.f32 %v265, %v248
  %267 = vadd.xlane.f32.xlu0 %v266
  %v268 = vpop.xlane.xlu0 %267
  %v269 = vadd.f32 %v197, %v199
  %v270 = vadd.f32 %v269, %v250
  %v271 = vadd.f32 %v270, %v252
  %272 = vadd.xlane.f32.xlu0 %v271
  %v273 = vpop.xlane.xlu0 %272
  %v274 = vadd.f32 %v203, %v205
  %v275 = vadd.f32 %v274, %v256
  %v276 = vadd.f32 %v275, %v258
  %277 = vadd.xlane.f32.xlu0 %v276
  %v278 = vpop.xlane.xlu0 %277
  %v279 = vadd.f32 %v207, %v209
  %v280 = vadd.f32 %v279, %v260
  %v281 = vadd.f32 %v280, %v262
  %282 = vadd.xlane.f32.xlu0 %v281
  %v283 = vpop.xlane.xlu0 %282
  %v284 = vrcp.pop 512.0
  %v285 = vmul.f32 %v268, %v284
  %v286 = vmul.f32 %v273, %v284
  %v287 = vmul.f32 %v278, %v284
  %v288 = vmul.f32 %v283, %v284
  %v289 = vmul.f32 %v193, %v193
  %v290 = vmul.f32 %v195, %v195
  %v291 = vmul.f32 %v246, %v246
  %v292 = vmul.f32 %v248, %v248
  %v293 = vmul.f32 %v197, %v197
  %v294 = vmul.f32 %v199, %v199
  %v295 = vmul.f32 %v250, %v250
  %v296 = vmul.f32 %v252, %v252
  %v297 = vmul.f32 %v203, %v203
  %v298 = vmul.f32 %v205, %v205
  %v299 = vmul.f32 %v256, %v256
  %v300 = vmul.f32 %v258, %v258
  %v301 = vmul.f32 %v207, %v207
  %v302 = vmul.f32 %v209, %v209
  %v303 = vmul.f32 %v260, %v260
  %v304 = vmul.f32 %v262, %v262
  %v305 = vadd.f32 %v289, %v290
  %v306 = vadd.f32 %v305, %v291
  %v307 = vadd.f32 %v306, %v292
  %308 = vadd.xlane.f32.xlu0 %v307
  %v309 = vpop.xlane.xlu0 %308
  %v310 = vadd.f32 %v293, %v294
  %v311 = vadd.f32 %v310, %v295
  %v312 = vadd.f32 %v311, %v296
  %313 = vadd.xlane.f32.xlu0 %v312
  %v314 = vpop.xlane.xlu0 %313
  %v315 = vadd.f32 %v297, %v298
  %v316 = vadd.f32 %v315, %v299
  %v317 = vadd.f32 %v316, %v300
  %318 = vadd.xlane.f32.xlu0 %v317
  %v319 = vpop.xlane.xlu0 %318
  %v320 = vadd.f32 %v301, %v302
  %v321 = vadd.f32 %v320, %v303
  %v322 = vadd.f32 %v321, %v304
  %323 = vadd.xlane.f32.xlu0 %v322
  %v324 = vpop.xlane.xlu0 %323
  %v325 = vmul.f32 %v309, %v284
  %v326 = vmul.f32 %v314, %v284
  %v327 = vmul.f32 %v319, %v284
  %v328 = vmul.f32 %v324, %v284
  %v329 = vmul.f32 %v285, %v285
  %v330 = vmul.f32 %v286, %v286
  %v331 = vmul.f32 %v287, %v287
  %v332 = vmul.f32 %v288, %v288
  %v333 = vsub.f32 %v325, %v329
  %v334 = vsub.f32 %v326, %v330
  %v335 = vsub.f32 %v327, %v331
  %v336 = vsub.f32 %v328, %v332
  %v337 = vadd.f32 %v333, 1e-05
  %v338 = vadd.f32 %v334, 1e-05
  %v339 = vadd.f32 %v335, 1e-05
  %v340 = vadd.f32 %v336, 1e-05
  %v341 = vrsqrt.pop %v337
  %v342 = vrsqrt.pop %v338
  %v343 = vrsqrt.pop %v339
  %v344 = vrsqrt.pop %v340
  %v345 = vmul.f32 %v31, %v341
  %v346 = vmul.f32 %v32, %v342
  %v347 = vmul.f32 %v33, %v343
  %v348 = vmul.f32 %v34, %v344
  %v349 = vmul.f32 %v285, %v345
  %v350 = vmul.f32 %v286, %v346
  %v351 = vmul.f32 %v287, %v347
  %v352 = vmul.f32 %v288, %v348
  %v353 = vsub.f32 %v35, %v349
  %v354 = vsub.f32 %v36, %v350
  %v355 = vsub.f32 %v37, %v351
  %v356 = vsub.f32 %v38, %v352
  %358 = vset.pattern.permute.xlu0 0
  %359 = vperm.xlu0 %358, %v345
  %v360 = vpop.permute.xlu0 %359
  %363 = vset.pattern.permute.xlu0 0
  %364 = vperm.xlu0 %363, %v346
  %v365 = vpop.permute.xlu0 %364
  %368 = vset.pattern.permute.xlu0 0
  %369 = vperm.xlu0 %368, %v347
  %v370 = vpop.permute.xlu0 %369
  %373 = vset.pattern.permute.xlu0 0
  %374 = vperm.xlu0 %373, %v348
  %v375 = vpop.permute.xlu0 %374
  %v377 = vmul.f32 %v193, %v360
  %v378 = vmul.f32 %v195, %v360
  %v379 = vmul.f32 %v246, %v360
  %v380 = vmul.f32 %v248, %v360
  %v381 = vmul.f32 %v197, %v365
  %v382 = vmul.f32 %v199, %v365
  %v383 = vmul.f32 %v250, %v365
  %v384 = vmul.f32 %v252, %v365
  %v385 = vmul.f32 %v203, %v370
  %v386 = vmul.f32 %v205, %v370
  %v387 = vmul.f32 %v256, %v370
  %v388 = vmul.f32 %v258, %v370
  %v389 = vmul.f32 %v207, %v375
  %v390 = vmul.f32 %v209, %v375
  %v391 = vmul.f32 %v260, %v375
  %v392 = vmul.f32 %v262, %v375
  %394 = vset.pattern.permute.xlu0 0
  %395 = vperm.xlu0 %394, %v353
  %v396 = vpop.permute.xlu0 %395
  %399 = vset.pattern.permute.xlu0 0
  %400 = vperm.xlu0 %399, %v354
  %v401 = vpop.permute.xlu0 %400
  %404 = vset.pattern.permute.xlu0 0
  %405 = vperm.xlu0 %404, %v355
  %v406 = vpop.permute.xlu0 %405
  %409 = vset.pattern.permute.xlu0 0
  %410 = vperm.xlu0 %409, %v356
  %v411 = vpop.permute.xlu0 %410
  %v413 = vadd.f32 %v377, %v396
  %v414 = vadd.f32 %v378, %v396
  %v415 = vadd.f32 %v379, %v396
  %v416 = vadd.f32 %v380, %v396
  %v417 = vadd.f32 %v381, %v401
  %v418 = vadd.f32 %v382, %v401
  %v419 = vadd.f32 %v383, %v401
  %v420 = vadd.f32 %v384, %v401
  %v421 = vadd.f32 %v385, %v406
  %v422 = vadd.f32 %v386, %v406
  %v423 = vadd.f32 %v387, %v406
  %v424 = vadd.f32 %v388, %v406
  %v425 = vadd.f32 %v389, %v411
  %v426 = vadd.f32 %v390, %v411
  %v427 = vadd.f32 %v391, %v411
  %v428 = vadd.f32 %v392, %v411
  %v429 = vmax.f32 %v413, 0.0
  %v430 = vmax.f32 %v414, 0.0
  %v431 = vmax.f32 %v415, 0.0
  %v432 = vmax.f32 %v416, 0.0
  %v433 = vmax.f32 %v417, 0.0
  %v434 = vmax.f32 %v418, 0.0
  %v435 = vmax.f32 %v419, 0.0
  %v436 = vmax.f32 %v420, 0.0
  %v437 = vmax.f32 %v421, 0.0
  %v438 = vmax.f32 %v422, 0.0
  %v439 = vmax.f32 %v423, 0.0
  %v440 = vmax.f32 %v424, 0.0
  %v441 = vmax.f32 %v425, 0.0
  %v442 = vmax.f32 %v426, 0.0
  %v443 = vmax.f32 %v427, 0.0
  %v444 = vmax.f32 %v428, 0.0
  %v445 = vadd.f32 %v429, %v430
  %446 = vadd.xlane.f32.xlu0 %v445
  %v447 = vpop.xlane.xlu0 %446
  %v448 = vadd.f32 %v433, %v434
  %449 = vadd.xlane.f32.xlu0 %v448
  %v450 = vpop.xlane.xlu0 %449
  %v451 = vadd.f32 %v437, %v438
  %452 = vadd.xlane.f32.xlu0 %v451
  %v453 = vpop.xlane.xlu0 %452
  %v454 = vadd.f32 %v441, %v442
  %455 = vadd.xlane.f32.xlu0 %v454
  %v456 = vpop.xlane.xlu0 %455
  %v457 = vrcp.pop 256.0
  %v458 = vmul.f32 %v447, %v457
  %v459 = vmul.f32 %v450, %v457
  %v460 = vmul.f32 %v453, %v457
  %v461 = vmul.f32 %v456, %v457
  %v462 = vadd.f32 %v431, %v432
  %463 = vadd.xlane.f32.xlu0 %v462
  %v464 = vpop.xlane.xlu0 %463
  %v465 = vadd.f32 %v435, %v436
  %466 = vadd.xlane.f32.xlu0 %v465
  %v467 = vpop.xlane.xlu0 %466
  %v468 = vadd.f32 %v439, %v440
  %469 = vadd.xlane.f32.xlu0 %v468
  %v470 = vpop.xlane.xlu0 %469
  %v471 = vadd.f32 %v443, %v444
  %472 = vadd.xlane.f32.xlu0 %v471
  %v473 = vpop.xlane.xlu0 %472
  %v474 = vmul.f32 %v464, %v457
  %v475 = vmul.f32 %v467, %v457
  %v476 = vmul.f32 %v470, %v457
  %v477 = vmul.f32 %v473, %v457
  %v478 = vmax.f32 %v429, %v430
  %479 = vmax.xlane.f32.xlu0 %v478
  %v480 = vpop.xlane.xlu0 %479
  %v481 = vmax.f32 %v433, %v434
  %482 = vmax.xlane.f32.xlu0 %v481
  %v483 = vpop.xlane.xlu0 %482
  %v484 = vmax.f32 %v437, %v438
  %485 = vmax.xlane.f32.xlu0 %v484
  %v486 = vpop.xlane.xlu0 %485
  %v487 = vmax.f32 %v441, %v442
  %488 = vmax.xlane.f32.xlu0 %v487
  %v489 = vpop.xlane.xlu0 %488
  %v490 = vmax.f32 %v431, %v432
  %491 = vmax.xlane.f32.xlu0 %v490
  %v492 = vpop.xlane.xlu0 %491
  %v493 = vmax.f32 %v435, %v436
  %494 = vmax.xlane.f32.xlu0 %v493
  %v495 = vpop.xlane.xlu0 %494
  %v496 = vmax.f32 %v439, %v440
  %497 = vmax.xlane.f32.xlu0 %v496
  %v498 = vpop.xlane.xlu0 %497
  %v499 = vmax.f32 %v443, %v444
  %500 = vmax.xlane.f32.xlu0 %v499
  %v501 = vpop.xlane.xlu0 %500
  %vm502 = vcmask 7168
  %v503 = vsel %vm502, %v458, %v474
  %v504 = vsel %vm502, %v459, %v475
  %v505 = vsel %vm502, %v460, %v476
  %v506 = vsel %vm502, %v461, %v477
  %vm507 = vcmask 15360
  %v508 = vsel %vm507, %v503, %v480
  %v509 = vsel %vm507, %v504, %v483
  %v510 = vsel %vm507, %v505, %v486
  %v511 = vsel %vm507, %v506, %v489
  %vm512 = vcmask 23552
  %v513 = vsel %vm512, %v508, %v492
  %v514 = vsel %vm512, %v509, %v495
  %v515 = vsel %vm512, %v510, %v498
  %v516 = vsel %vm512, %v511, %v501
  %vm517 = vcmask 261120
  %v519 = vsel %vm517, %v39, 0
  %521 = vmatprep.subr.mxu0 0.0
  %522 = vmatpush1.msra.mxu0 %v513
  %523 = vmatprep.subr.mxu0 0.0
  %524 = vmatpush1.msra.mxu0 %v514
  %525 = vmatprep.subr.mxu0 0.0
  %526 = vmatpush1.msra.mxu0 %v515
  %527 = vmatprep.subr.mxu0 0.0
  %528 = vmatpush1.msra.mxu0 %v516
  %529 = vmatprep.subr.mxu0 0.0
  %530 = vmatpush1.msra.mxu0 0.0
  %531 = vmatprep.subr.mxu0 0.0
  %532 = vmatpush1.msra.mxu0 0.0
  %533 = vmatprep.subr.mxu0 0.0
  %534 = vmatpush1.msra.mxu0 0.0
  %535 = vmatprep.subr.mxu0 0.0
  %536 = vmatpush1.msra.mxu0 0.0
  %537 = vmatprep.subr.mxu0 0.0
  %538 = vmatpush1.msra.mxu0 0.0
  %539 = vmatprep.subr.mxu0 0.0
  %540 = vmatpush1.msra.mxu0 0.0
  %541 = vmatprep.subr.mxu0 0.0
  %542 = vmatpush1.msra.mxu0 0.0
  %543 = vmatprep.subr.mxu0 0.0
  %544 = vmatpush1.msra.mxu0 0.0
  %545 = vmatprep.subr.mxu0 0.0
  %546 = vmatpush1.msra.mxu0 0.0
  %547 = vmatprep.subr.mxu0 0.0
  %548 = vmatpush1.msra.mxu0 0.0
  %549 = vmatprep.subr.mxu0 0.0
  %550 = vmatpush1.msra.mxu0 0.0
  %551 = vmatprep.subr.mxu0 0.0
  %552 = vmatpush1.msra.mxu0 0.0
  %553 = vmatprep.subr.mxu0 0.0
  %554 = vmatpush1.msra.mxu0 0.0
  %555 = vmatprep.subr.mxu0 0.0
  %556 = vmatpush1.msra.mxu0 0.0
  %557 = vmatprep.subr.mxu0 0.0
  %558 = vmatpush1.msra.mxu0 0.0
  %559 = vmatprep.subr.mxu0 0.0
  %560 = vmatpush1.msra.mxu0 0.0
  %561 = vmatprep.subr.mxu0 0.0
  %562 = vmatpush1.msra.mxu0 0.0
  %563 = vmatprep.subr.mxu0 0.0
  %564 = vmatpush1.msra.mxu0 0.0
  %565 = vmatprep.subr.mxu0 0.0
  %566 = vmatpush1.msra.mxu0 0.0
  %567 = vmatprep.subr.mxu0 0.0
  %568 = vmatpush1.msra.mxu0 0.0
  %569 = vmatprep.subr.mxu0 0.0
  %570 = vmatpush1.msra.mxu0 0.0
  %571 = vmatprep.subr.mxu0 0.0
  %572 = vmatpush1.msra.mxu0 0.0
  %573 = vmatprep.subr.mxu0 0.0
  %574 = vmatpush1.msra.mxu0 0.0
  %575 = vmatprep.subr.mxu0 0.0
  %576 = vmatpush1.msra.mxu0 0.0
  %577 = vmatprep.subr.mxu0 0.0
  %578 = vmatpush1.msra.mxu0 0.0
  %579 = vmatprep.subr.mxu0 0.0
  %580 = vmatpush1.msra.mxu0 0.0
  %581 = vmatprep.subr.mxu0 0.0
  %582 = vmatpush1.msra.mxu0 0.0
  %583 = vmatprep.subr.mxu0 0.0
  %584 = vmatpush1.msra.mxu0 0.0
  %585 = vmatprep.mubr.f32.mxu0 0.0
  %586 = vmatmul.mubr.f32.gmra.mrb[0].mxu0 %v519
  %v587 = vpop.f32.mrb[0].mxu0
  %v588 = vadd.f32 0.0, %v587
  %v589 = vpop.f32.mrb[0].mxu0
  %590 = vdwg.mxu0
  %v591 = vmax.f32 %v588, 0.0
  %v593 = vsel %vm507, %v40, 0
  %v596 = vsel %vm507, %v41, 0
  %v599 = vsel %vm507, %v42, 0
  %v602 = vsel %vm507, %v43, 0
  %v605 = vsel %vm145, %v591, 0
  %607 = vmatprep.subr.mxu0 0.0
  %608 = vmatpush1.msra.mxu0 %v605
  %609 = vmatprep.subr.mxu0 0.0
  %610 = vmatpush1.msra.mxu0 0.0
  %611 = vmatprep.subr.mxu0 0.0
  %612 = vmatpush1.msra.mxu0 0.0
  %613 = vmatprep.subr.mxu0 0.0
  %614 = vmatpush1.msra.mxu0 0.0
  %615 = vmatprep.subr.mxu0 0.0
  %616 = vmatpush1.msra.mxu0 0.0
  %617 = vmatprep.subr.mxu0 0.0
  %618 = vmatpush1.msra.mxu0 0.0
  %619 = vmatprep.subr.mxu0 0.0
  %620 = vmatpush1.msra.mxu0 0.0
  %621 = vmatprep.subr.mxu0 0.0
  %622 = vmatpush1.msra.mxu0 0.0
  %623 = vmatprep.subr.mxu0 0.0
  %624 = vmatpush1.msra.mxu0 0.0
  %625 = vmatprep.subr.mxu0 0.0
  %626 = vmatpush1.msra.mxu0 0.0
  %627 = vmatprep.subr.mxu0 0.0
  %628 = vmatpush1.msra.mxu0 0.0
  %629 = vmatprep.subr.mxu0 0.0
  %630 = vmatpush1.msra.mxu0 0.0
  %631 = vmatprep.subr.mxu0 0.0
  %632 = vmatpush1.msra.mxu0 0.0
  %633 = vmatprep.subr.mxu0 0.0
  %634 = vmatpush1.msra.mxu0 0.0
  %635 = vmatprep.subr.mxu0 0.0
  %636 = vmatpush1.msra.mxu0 0.0
  %637 = vmatprep.subr.mxu0 0.0
  %638 = vmatpush1.msra.mxu0 0.0
  %639 = vmatprep.subr.mxu0 0.0
  %640 = vmatpush1.msra.mxu0 0.0
  %641 = vmatprep.subr.mxu0 0.0
  %642 = vmatpush1.msra.mxu0 0.0
  %643 = vmatprep.subr.mxu0 0.0
  %644 = vmatpush1.msra.mxu0 0.0
  %645 = vmatprep.subr.mxu0 0.0
  %646 = vmatpush1.msra.mxu0 0.0
  %647 = vmatprep.subr.mxu0 0.0
  %648 = vmatpush1.msra.mxu0 0.0
  %649 = vmatprep.subr.mxu0 0.0
  %650 = vmatpush1.msra.mxu0 0.0
  %651 = vmatprep.subr.mxu0 0.0
  %652 = vmatpush1.msra.mxu0 0.0
  %653 = vmatprep.subr.mxu0 0.0
  %654 = vmatpush1.msra.mxu0 0.0
  %655 = vmatprep.subr.mxu0 0.0
  %656 = vmatpush1.msra.mxu0 0.0
  %657 = vmatprep.subr.mxu0 0.0
  %658 = vmatpush1.msra.mxu0 0.0
  %659 = vmatprep.subr.mxu0 0.0
  %660 = vmatpush1.msra.mxu0 0.0
  %661 = vmatprep.subr.mxu0 0.0
  %662 = vmatpush1.msra.mxu0 0.0
  %663 = vmatprep.subr.mxu0 0.0
  %664 = vmatpush1.msra.mxu0 0.0
  %665 = vmatprep.subr.mxu0 0.0
  %666 = vmatpush1.msra.mxu0 0.0
  %667 = vmatprep.subr.mxu0 0.0
  %668 = vmatpush1.msra.mxu0 0.0
  %669 = vmatprep.subr.mxu0 0.0
  %670 = vmatpush1.msra.mxu0 0.0
  %671 = vmatprep.mubr.f32.mxu0 0.0
  %672 = vmatmul.mubr.f32.gmra.mrb[0].mxu0 %v593
  %v673 = vpop.f32.mrb[0].mxu0
  %v674 = vadd.f32 0.0, %v673
  %v675 = vpop.f32.mrb[0].mxu0
  %676 = vmatprep.mubr.f32.mxu0 0.0
  %677 = vmatmul.mubr.f32.gmra.mrb[0].mxu0 %v596
  %v678 = vpop.f32.mrb[0].mxu0
  %v679 = vadd.f32 0.0, %v678
  %v680 = vpop.f32.mrb[0].mxu0
  %681 = vmatprep.mubr.f32.mxu0 0.0
  %682 = vmatmul.mubr.f32.gmra.mrb[0].mxu0 %v599
  %v683 = vpop.f32.mrb[0].mxu0
  %v684 = vadd.f32 0.0, %v683
  %v685 = vpop.f32.mrb[0].mxu0
  %686 = vmatprep.mubr.f32.mxu0 0.0
  %687 = vmatmul.mubr.f32.gmra.mrb[0].mxu0 %v602
  %v688 = vpop.f32.mrb[0].mxu0
  %v689 = vadd.f32 0.0, %v688
  %v690 = vpop.f32.mrb[0].mxu0
  %691 = vdwg.mxu0
  %696 = vrot.lane.b32.xlu0 %v674, 126
  %v697 = vpop.permute.xlu0 %696
  %698 = vrot.lane.b32.xlu0 %v679, 126
  %v699 = vpop.permute.xlu0 %698
  %700 = vrot.lane.b32.xlu0 %v684, 126
  %v701 = vpop.permute.xlu0 %700
  %702 = vrot.lane.b32.xlu0 %v689, 126
  %v703 = vpop.permute.xlu0 %702
  %v708 = vadd.f32 %v674, %v697
  %v709 = vadd.f32 %v679, %v699
  %v710 = vadd.f32 %v684, %v701
  %v711 = vadd.f32 %v689, %v703
  %v712 = vxor.u32 %v708, 2147483648
  %v713 = vxor.u32 %v709, 2147483648
  %v714 = vxor.u32 %v710, 2147483648
  %v715 = vxor.u32 %v711, 2147483648
  %v716 = vmul.f32 %v712, 1.442695
  %v717 = vpow.pop %v716
  %v718 = vmul.f32 %v713, 1.442695
  %v719 = vpow.pop %v718
  %v720 = vmul.f32 %v714, 1.442695
  %v721 = vpow.pop %v720
  %v722 = vmul.f32 %v715, 1.442695
  %v723 = vpow.pop %v722
  %v724 = vadd.f32 %v717, 1.0
  %v725 = vadd.f32 %v719, 1.0
  %v726 = vadd.f32 %v721, 1.0
  %v727 = vadd.f32 %v723, 1.0
  %v728 = vrcp.pop %v724
  %v729 = vmul.f32 1.0, %v728
  %v730 = vrcp.pop %v725
  %v731 = vmul.f32 1.0, %v730
  %v732 = vrcp.pop %v726
  %v733 = vmul.f32 1.0, %v732
  %v734 = vrcp.pop %v727
  %v735 = vmul.f32 1.0, %v734
  %737 = vset.pattern.permute.xlu0 0
  %738 = vperm.xlu0 %737, %v729
  %v739 = vpop.permute.xlu0 %738
  %742 = vset.pattern.permute.xlu0 0
  %743 = vperm.xlu0 %742, %v731
  %v744 = vpop.permute.xlu0 %743
  %747 = vset.pattern.permute.xlu0 0
  %748 = vperm.xlu0 %747, %v733
  %v749 = vpop.permute.xlu0 %748
  %752 = vset.pattern.permute.xlu0 0
  %753 = vperm.xlu0 %752, %v735
  %v754 = vpop.permute.xlu0 %753
  %v756 = vmul.f32 %v429, %v739
  %v757 = vmul.f32 %v430, %v739
  %v758 = vmul.f32 %v433, %v744
  %v759 = vmul.f32 %v434, %v744
  %v760 = vmul.f32 %v437, %v749
  %v761 = vmul.f32 %v438, %v749
  %v762 = vmul.f32 %v441, %v754
  %v763 = vmul.f32 %v442, %v754
  %764 = vst [vmem:[%s7] sm:$0xff] %v756
  %765 = vst [vmem:[%s7 + $0x8] sm:$0xff] %v757
  %766 = vst [vmem:[%s7 + $0x10] sm:$0xff] %v758
  %767 = vst [vmem:[%s7 + $0x18] sm:$0xff] %v759
  %768 = vst [vmem:[%s7 + $0x20] sm:$0xff] %v760
  %769 = vst [vmem:[%s7 + $0x28] sm:$0xff] %v761
  %770 = vst [vmem:[%s7 + $0x30] sm:$0xff] %v762
  %771 = vst [vmem:[%s7 + $0x38] sm:$0xff] %v763
  %772 = vset.pattern.permute.xlu0 1
  %773 = vperm.xlu0 %772, %v729
  %v774 = vpop.permute.xlu0 %773
  %776 = vset.pattern.permute.xlu0 1
  %777 = vperm.xlu0 %776, %v731
  %v778 = vpop.permute.xlu0 %777
  %780 = vset.pattern.permute.xlu0 1
  %781 = vperm.xlu0 %780, %v733
  %v782 = vpop.permute.xlu0 %781
  %784 = vset.pattern.permute.xlu0 1
  %785 = vperm.xlu0 %784, %v735
  %v786 = vpop.permute.xlu0 %785
  %v788 = vmul.f32 %v431, %v774
  %v789 = vmul.f32 %v432, %v774
  %v790 = vmul.f32 %v435, %v778
  %v791 = vmul.f32 %v436, %v778
  %v792 = vmul.f32 %v439, %v782
  %v793 = vmul.f32 %v440, %v782
  %v794 = vmul.f32 %v443, %v786
  %v795 = vmul.f32 %v444, %v786
  %s796 = scalar_lea.vmem %s7, 64
  %797 = vst [vmem:[%s796] sm:$0xff] %v788
  %798 = vst [vmem:[%s796 + $0x8] sm:$0xff] %v789
  %799 = vst [vmem:[%s796 + $0x10] sm:$0xff] %v790
  %800 = vst [vmem:[%s796 + $0x18] sm:$0xff] %v791
  %801 = vst [vmem:[%s796 + $0x20] sm:$0xff] %v792
  %802 = vst [vmem:[%s796 + $0x28] sm:$0xff] %v793
  %803 = vst [vmem:[%s796 + $0x30] sm:$0xff] %v794
  %804 = vst [vmem:[%s796 + $0x38] sm:$0xff] %v795
  // Predicated region
  $region30: #{acnn_block.1} parent=0 // pred_check
    _
  $region31: #{acnn_block.1} parent=0 // pred_check_branch
    %806 = sbr.rel (0) target = $region33
  $region32: #{acnn_block.1} parent=0 // pred_region
    _
  $region33: #{acnn_block.1} parent=0 // pred_fallthru
    _
  // Predicated region
  $region34: #{acnn_block.1} parent=0 // pred_check
    _
  $region35: #{acnn_block.1} parent=0 // pred_check_branch
    %808 = sbr.rel (0) target = $region37
  $region36: #{acnn_block.1} parent=0 // pred_region
    _
  $region37: #{acnn_block.1} parent=0 // pred_fallthru
    _

</llo_original>
